<compile_context>
chip_gen: v7x
topology: tpu7x:2x2x1
jax: 0.10.0
libtpu: 0.0.40
codegen_flags: <defaults>
</compile_context>

<pallas_src>
import functools

import jax
import jax.numpy as jnp
from jax.experimental import pallas as pl
from jax.experimental.pallas import tpu as pltpu


def cmix_kernel(k_ref, wk_ref, wv_ref, o_ref):
    """Grid: (row_blocks, h_blocks).  The H axis reduces directly into o_ref
    (f32), whose block index is invariant across it (VMEM-resident)."""
    j = pl.program_id(1)

    @pl.when(j == 0)
    def _init():
        o_ref[...] = jnp.zeros_like(o_ref)

    # First matmul on the MXU: (tm, C) bf16 x (C, th) bf16 -> (tm, th) f32.
    h = jnp.dot(k_ref[...], wk_ref[...], preferred_element_type=jnp.float32)
    h = jnp.maximum(h, 0.0)
    h = h * h                                   # relu(.)**2 in f32 (VPU)

    # Second matmul: (tm, th) bf16 x (th, C) bf16 -> accumulate f32 into o_ref.
    o_ref[...] += jnp.dot(h.astype(wv_ref.dtype), wv_ref[...],
                          preferred_element_type=jnp.float32)


def _round_up(n, m):
    return ((n + m - 1) // m) * m


def _vmem_capacity_bytes():
    try:
        cap = getattr(pltpu.get_tpu_info(), "vmem_capacity_bytes", None)
        if cap:
            return int(cap)
    except Exception:
        pass
    return 64 * 1024 * 1024  # conservative fallback (v7x per-TC VMEM)


def rwkv_cmix_x070(x, time_maa_k, wk, wv, *, tm=None, th=None):
    """RWKV-v7 channel mix.

    x          : (B, T, C) f32
    time_maa_k : (1, 1, C) f32
    wk         : (C, 4C)  (torch `key.weight` pre-transposed; ideally bf16)
    wv         : (4C, C)  (torch `value.weight` pre-transposed; ideally bf16)

    C should be a multiple of 128 (256 on v6e/v7x) for lane-dense stores and
    full MXU utilisation.
    """
    B, T, C = x.shape
    H = wk.shape[1]
    assert wk.shape == (C, H) and wv.shape == (H, C)

    # Hoisted cast: store bf16 weight copies at parameter-load time and pass
    # them in; then these are no-ops (no per-call full-weight HBM rewrite).
    wk_b = wk if wk.dtype == jnp.bfloat16 else wk.astype(jnp.bfloat16)
    wv_b = wv if wv.dtype == jnp.bfloat16 else wv.astype(jnp.bfloat16)

    # ---- token mix: one fused XLA elementwise pass, single bf16 stream -----
    # time_shift (ZeroPad2d((0,0,1,-1))): xx[t] = x[t-1], zero at t=0.
    x_shift = jnp.pad(x, ((0, 0), (1, 0), (0, 0)))[:, :-1, :]
    k = x + (x_shift - x) * time_maa_k          # f32 elementwise
    k = k.astype(jnp.bfloat16)                  # bf16 MXU input stream

    M = B * T
    kf = k.reshape(M, C)

    # ---- generation-aware tile sizing ---------------------------------------
    vmem_cap = _vmem_capacity_bytes()
    small_vmem = vmem_cap <= 80 * 1024 * 1024   # v7x-class (64 MiB per TC)

    if tm is None:
        # Arithmetic intensity ~ tm FLOP/byte when weights are re-streamed per
        # row block: target ~1024 on v5e/v6e (128 MiB VMEM), ~512 on v7x.
        tm = 512 if small_vmem else 1024
    tm = min(tm, _round_up(M, 16))
    tm = max(16, _round_up(tm, 16))             # bf16: 16 sublanes per vreg

    if th is None:
        weight_bytes = 2 * C * H * 2            # both bf16 weight matrices
        if weight_bytes <= int(0.35 * vmem_cap):
            th = H                               # grid-invariant: DMA'd once
        else:
            th = 512 if small_vmem else 1024
    th = min(th, H)
    th = max(128, _round_up(th, 128))

    # Shrink tiles if the double-buffered working set would overflow VMEM.
    def _need(tm_, th_):
        return (2 * tm_ * C * 2                 # k blocks (bf16, 2 buffers)
                + 2 * C * th_ * 2               # wk blocks (bf16, 2 buffers)
                + 2 * th_ * C * 2               # wv blocks (bf16, 2 buffers)
                + 2 * tm_ * C * 4)              # out blocks (f32 accumulator)
    budget = int(0.7 * vmem_cap)
    while _need(tm, th) > budget and th > 256:
        th = max(256, th // 2)
    while _need(tm, th) > budget and tm > 256:
        tm = max(256, _round_up(tm // 2, 16))

    # ---- padding -------------------------------------------------------------
    Mp = _round_up(M, tm)
    if Mp != M:
        # Safe: key/value have no bias, so zero-padded rows produce zero output.
        kf = jnp.pad(kf, ((0, Mp - M), (0, 0)))

    Hp = _round_up(H, th)
    if Hp != H:
        # Zero-pad the hidden dim: padded wk columns give h == 0, contributing
        # nothing through the (also zero) padded wv rows.
        wk_b = jnp.pad(wk_b, ((0, 0), (0, Hp - H)))
        wv_b = jnp.pad(wv_b, ((0, Hp - H), (0, 0)))

    vmem_limit = min(int(0.9 * vmem_cap), _need(tm, th) + (16 << 20))

    grid = (Mp // tm, Hp // th)
    out = pl.pallas_call(
        cmix_kernel,
        out_shape=jax.ShapeDtypeStruct((Mp, C), jnp.float32),
        grid=grid,
        in_specs=[
            pl.BlockSpec((tm, C), lambda i, j: (i, 0)),   # mixed activations
            pl.BlockSpec((C, th), lambda i, j: (0, j)),   # key-weight chunk
            pl.BlockSpec((th, C), lambda i, j: (j, 0)),   # value-weight chunk
        ],
        out_specs=pl.BlockSpec((tm, C), lambda i, j: (i, 0)),
        compiler_params=pltpu.CompilerParams(
            dimension_semantics=("parallel", "arbitrary"),
            vmem_limit_bytes=vmem_limit),
    )(kf, wk_b, wv_b)

    return out[:M].reshape(B, T, C).astype(x.dtype)


def reference_f32(x, time_maa_k, wk, wv):
    """True f32 forward of the torch module."""
    x_shift = jnp.pad(x, ((0, 0), (1, 0), (0, 0)))[:, :-1, :]
    k = x + (x_shift - x) * time_maa_k
    h = jnp.maximum(jnp.dot(k, wk, precision=jax.lax.Precision.HIGHEST), 0.0) ** 2
    return jnp.dot(h, wv, precision=jax.lax.Precision.HIGHEST)


def reference_bf16(x, time_maa_k, wk, wv):
    """Reference with the same bf16-input / f32-accumulate numerics as the kernel."""
    x_shift = jnp.pad(x, ((0, 0), (1, 0), (0, 0)))[:, :-1, :]
    k = (x + (x_shift - x) * time_maa_k).astype(jnp.bfloat16)
    h = jnp.dot(k, wk.astype(jnp.bfloat16), preferred_element_type=jnp.float32)
    h = jnp.maximum(h, 0.0) ** 2
    return jnp.dot(h.astype(jnp.bfloat16), wv.astype(jnp.bfloat16),
                   preferred_element_type=jnp.float32)


if __name__ == "__main__":
    # Small but TPU-friendly shapes: C multiple of 128 (lane-dense stores).
    B, T, C = 2, 8, 128
    H = 4 * C

    key = jax.random.PRNGKey(0)
    k_x, k_maa, k_wk, k_wv = jax.random.split(key, 4)

    # Shapes match the torch module:
    #   time_maa_k  : (1, 1, C)
    #   key.weight  : (4C, C) -> stored pre-transposed as wk (C, 4C)
    #   value.weight: (C, 4C) -> stored pre-transposed as wv (4C, C)
    x = jax.random.normal(k_x, (B, T, C), dtype=jnp.float32)
    time_maa_k = jax.random.uniform(k_maa, (1, 1, C), dtype=jnp.float32)
    wk = jax.random.normal(k_wk, (C, H), dtype=jnp.float32) * (1.0 / (C ** 0.5))
    wv = jax.random.normal(k_wv, (H, C), dtype=jnp.float32) * (1.0 / (H ** 0.5))

    # Hoisted weight cast: done once (as at parameter-load time), reused per call.
    wk_bf16 = wk.astype(jnp.bfloat16)
    wv_bf16 = wv.astype(jnp.bfloat16)

    # th=256 forces two H steps so the accumulate-into-output reduction path
    # (pl.when init + o_ref += ...) is exercised.
    run = jax.jit(functools.partial(rwkv_cmix_x070, th=256))
    out = jax.block_until_ready(run(x, time_maa_k, wk_bf16, wv_bf16))

    assert out.shape == (B, T, C) and out.dtype == jnp.float32

    # Tight check against a reference with identical bf16-MXU numerics.
    ref_m = reference_bf16(x, time_maa_k, wk, wv)
    assert jnp.allclose(out, ref_m, atol=1e-3, rtol=1e-3)

    # Loose sanity check against the true f32 module forward (bf16 MXU inputs
    # bound the achievable agreement).
    ref_f = reference_f32(x, time_maa_k, wk, wv)
    assert jnp.allclose(out, ref_f, atol=1e-1, rtol=1e-1)

    print("KERNEL_OK")
</pallas_src>

<mosaic_0001>
module attributes {stable_mosaic.version = 11 : i64} {
  func.func @cmix_kernel(%arg0: i32, %arg1: i32, %arg2: memref<16x128xbf16, #tpu.memory_space<vmem>>, %arg3: memref<128x256xbf16, #tpu.memory_space<vmem>>, %arg4: memref<256x128xbf16, #tpu.memory_space<vmem>>, %arg5: memref<16x128xf32, #tpu.memory_space<vmem>>) attributes {dimension_semantics = [#tpu.dimension_semantics<parallel>, #tpu.dimension_semantics<arbitrary>], iteration_bounds = array<i64: 1, 2>, scalar_prefetch = 0 : i64, scratch_operands = 0 : i64, tpu.core_type = #tpu.core_type<tc>, window_params = [{transform_indices = @transform_0, window_bounds = array<i64: 16, 128>}, {transform_indices = @transform_1, window_bounds = array<i64: 128, 256>}, {transform_indices = @transform_2, window_bounds = array<i64: 256, 128>}, {transform_indices = @transform_3, window_bounds = array<i64: 16, 128>}]} {
    %c0_i32 = arith.constant 0 : i32
    %0 = arith.cmpi eq, %arg1, %c0_i32 : i32
    %1 = arith.extui %0 : i1 to i32
    %c0_i32_0 = arith.constant 0 : i32
    %2 = arith.cmpi ne, %1, %c0_i32_0 : i32
    scf.if %2 {
      %cst_12 = arith.constant 0.000000e+00 : f32
      %15 = vector.broadcast %cst_12 : f32 to vector<16x128xf32>
      %c0_13 = arith.constant 0 : index
      %c0_14 = arith.constant 0 : index
      %16 = vector.load %arg5[%c0_13, %c0_14] : memref<16x128xf32, #tpu.memory_space<vmem>>, vector<16x128xf32>
      tpu.vector_store %arg5[%c0_13, %c0_14], %15 {strides = array<i32>} : memref<16x128xf32, #tpu.memory_space<vmem>>, vector<16x128xf32>,
    } else {
    }
    %c0 = arith.constant 0 : index
    %c0_1 = arith.constant 0 : index
    %3 = vector.load %arg2[%c0, %c0_1] : memref<16x128xbf16, #tpu.memory_space<vmem>>, vector<16x128xbf16>
    %c0_2 = arith.constant 0 : index
    %c0_3 = arith.constant 0 : index
    %4 = vector.load %arg3[%c0_2, %c0_3] : memref<128x256xbf16, #tpu.memory_space<vmem>>, vector<128x256xbf16>
    %cst = arith.constant dense<0.000000e+00> : vector<16x256xf32>
    %5 = tpu.matmul %3, %4, %cst {dimension_numbers = #tpu.dot_dimension_numbers<[1], [0], [0], [1], [0, 0, 1, 1], [], []>} : vector<16x128xbf16>, vector<128x256xbf16>, vector<16x256xf32> -> vector<16x256xf32>
    %cst_4 = arith.constant 0.000000e+00 : f32
    %6 = vector.broadcast %cst_4 : f32 to vector<16x256xf32>
    %7 = arith.maximumf %5, %6 : vector<16x256xf32>
    %8 = arith.mulf %7, %7 : vector<16x256xf32>
    %c0_5 = arith.constant 0 : index
    %c0_6 = arith.constant 0 : index
    %9 = vector.load %arg5[%c0_5, %c0_6] : memref<16x128xf32, #tpu.memory_space<vmem>>, vector<16x128xf32>
    %10 = arith.truncf %8 : vector<16x256xf32> to vector<16x256xbf16>
    %c0_7 = arith.constant 0 : index
    %c0_8 = arith.constant 0 : index
    %11 = vector.load %arg4[%c0_7, %c0_8] : memref<256x128xbf16, #tpu.memory_space<vmem>>, vector<256x128xbf16>
    %cst_9 = arith.constant dense<0.000000e+00> : vector<16x128xf32>
    %12 = tpu.matmul %10, %11, %cst_9 {dimension_numbers = #tpu.dot_dimension_numbers<[1], [0], [0], [1], [0, 0, 1, 1], [], []>} : vector<16x256xbf16>, vector<256x128xbf16>, vector<16x128xf32> -> vector<16x128xf32>
    %13 = arith.addf %9, %12 : vector<16x128xf32>
    %c0_10 = arith.constant 0 : index
    %c0_11 = arith.constant 0 : index
    %14 = vector.load %arg5[%c0_10, %c0_11] : memref<16x128xf32, #tpu.memory_space<vmem>>, vector<16x128xf32>
    tpu.vector_store %arg5[%c0_10, %c0_11], %13 {strides = array<i32>} : memref<16x128xf32, #tpu.memory_space<vmem>>, vector<16x128xf32>,
    return
  }
  func.func @transform_0(%arg0: i32, %arg1: i32) -> (i32, i32) {
    %c0_i32 = arith.constant 0 : i32
    %c0_i32_0 = arith.constant 0 : i32
    return %arg0, %c0_i32 : i32, i32
  }
  func.func @transform_1(%arg0: i32, %arg1: i32) -> (i32, i32) {
    %c0_i32 = arith.constant 0 : i32
    %c0_i32_0 = arith.constant 0 : i32
    return %c0_i32, %arg1 : i32, i32
  }
  func.func @transform_2(%arg0: i32, %arg1: i32) -> (i32, i32) {
    %c0_i32 = arith.constant 0 : i32
    %c0_i32_0 = arith.constant 0 : i32
    return %arg1, %c0_i32 : i32, i32
  }
  func.func @transform_3(%arg0: i32, %arg1: i32) -> (i32, i32) {
    %c0_i32 = arith.constant 0 : i32
    %c0_i32_0 = arith.constant 0 : i32
    return %arg0, %c0_i32 : i32, i32
  }
}

</mosaic_0001>

<llo_original>
// kernel: rwkv_cmix_x070.1
$region0: #{rwkv_cmix_x070.1}
  #allocation0 [shape = 'u32[]', space=smem, size = 0x4, offset = 0x4, fixed_abs, tag = 'smem constant byte address 0x4 - core index']
  #allocation1 [shape = 'u32[144,128]{1,0:T(1,128)}', space=vmem, size = 0x12000, scoped, tag = 'internal scratch']
  %s0 = inlined_call_operand.vmem [shape: bf16[16,128], index: 0, kind: input, shape index: {}]
  %s1 = inlined_call_operand.hbm [shape: bf16[128,512], index: 1, kind: input, shape index: {}]
  %s2 = inlined_call_operand.hbm [shape: bf16[512,128], index: 2, kind: input, shape index: {}]
  %s3 = inlined_call_operand.hbm [shape: f32[16,128], index: 3, kind: output, shape index: {}]
  %s4 = sld [smem:[#allocation0]]
  $region57: #{rwkv_cmix_x070.1} parent=0
    _
  %s6 = ssub.s32 1, %s4
  %s7 = scalar_select 0, %s6, %s4
  $region1: #{rwkv_cmix_x070.1} parent=0
    #allocation2 [shape = 'u8[131072]{0}', space=vmem, size = 0x20000, scoped, tag = 'input window, operand 1']
    #allocation3 [shape = 's32[2]{0}', space=sflag, size = 0x8, scoped, tag = 'scoped memory for rwkv_cmix_x070.1']
    #allocation4 [shape = 's32[2]{0}', space=sflag, size = 0x8, scoped, tag = 'scoped memory for rwkv_cmix_x070.1']
    #allocation5 [shape = 'u8[131072]{0}', space=vmem, size = 0x20000, scoped, tag = 'input window, operand 2']
    #allocation6 [shape = 's32[2]{0}', space=sflag, size = 0x8, scoped, tag = 'scoped memory for rwkv_cmix_x070.1']
    #allocation7 [shape = 'u8[8192]{0}', space=vmem, size = 0x2000, scoped, tag = 'output window, operand 0, single buffered']
    %8 = vsyncpa [#allocation3], 0
    %s9 = scalar_lea.sflag [#allocation3], 1
    %10 = vsyncpa %s9, 0
    %11 = vsyncpa [#allocation6], 0
    %s12 = scalar_lea.sflag [#allocation6], 1
    %13 = vsyncpa %s12, 0
    %14 = vsyncpa [#allocation4], 0
    loop: start=0, step=1, limit=4
    $region2: #{rwkv_cmix_x070.1} parent=1 // loop_pre_header
      _
    $region3: #{rwkv_cmix_x070.1} parent=1 // loop_header
      %s16 = sphi 0, %s20
      %p17 = scmp.ge.s32.totalorder %s16, 4
      %s23 = sphi 0, %s35
      %s24 = sphi 0, %s31
      %s25 = sphi 0, %s23
      %s26 = sphi 0, %s24
      %s27 = sphi 0, %s25
      %s28 = sphi 0, %s26
      %s38 = sphi 0, %s40
      %s41 = sphi 0, %s38
      %s42 = sphi 0, %s41
      %s58 = sphi 0, %s42
      %s64 = sphi 0, %s66
      %s67 = sphi 0, %s64
      %s68 = sphi 0, %s67
      %s84 = sphi 0, %s68
      %s90 = sphi 0, %s92
      %s93 = sphi 0, %s90
      %s94 = sphi 0, %s93
      %s110 = sphi 0, %s94
      %s116 = sphi 0, %s118
      %s119 = sphi 0, %s116
      %s120 = sphi 0, %s119
      %s136 = sphi 0, %s120
    $region4: #{rwkv_cmix_x070.1} parent=1 // loop_header_branch
      %19 = sbr.rel (%p17) target = $region8
    $region5: #{rwkv_cmix_x070.1} parent=1 // loop_body
      %s21 = ssub.s32 %s16, 1
      %s22 = ssub.s32 %s16, 2
      %s29 = sadd.s32 1, %s24
      %p30 = scmp.ge.s32.totalorder %s29, 2
      %s31 = scalar_select %p30, 0, %s29
      %s32 = sadd.s32 1, %s23
      %s33 = scalar_select %p30, %s32, %s23
      %p34 = scmp.ge.s32.totalorder %s33, 1
      %s35 = scalar_select %p34, 0, %s33
      %s36 = ssub.s32 %s23, %s35
      %p37 = scmp.eq.s32.totalorder %s36, 0
      %s39 = sadd.s32 %s38, 1
      %s40 = scalar_select %p37, %s38, %s39
      %p43 = pneg %p37
      %p44 = scmp.eq.s32.totalorder %s16, 1
      %p45 = por %p43, %p44
      %p46 = scmp.ne.s32.totalorder %s38, %s41
      %p47 = scmp.eq.s32.totalorder %s16, 0
      %p48 = por %p46, %p47
      %p49 = scmp.ne.s32.totalorder %s38, %s41
      %p50 = scmp.eq.s32.totalorder %s21, 1
      %p51 = por %p49, %p50
      %p52 = scmp.ne.s32.totalorder %s41, %s42
      %p53 = scmp.eq.s32.totalorder %s21, 0
      %p54 = por %p52, %p53
      %p55 = scmp.ne.s32.totalorder %s41, %s42
      %p56 = scmp.eq.s32.totalorder %s22, 1
      %p57 = por %p55, %p56
      %p59 = scmp.ne.s32.totalorder %s42, %s58
      %p60 = scmp.eq.s32.totalorder %s22, 0
      %p61 = por %p59, %p60
      %s62 = ssub.s32 %s24, %s31
      %p63 = scmp.eq.s32.totalorder %s62, 0
      %s65 = sadd.s32 %s64, 1
      %s66 = scalar_select %p63, %s64, %s65
      %p69 = pneg %p63
      %p70 = scmp.eq.s32.totalorder %s16, 1
      %p71 = por %p69, %p70
      %p72 = scmp.ne.s32.totalorder %s64, %s67
      %p73 = scmp.eq.s32.totalorder %s16, 0
      %p74 = por %p72, %p73
      %p75 = scmp.ne.s32.totalorder %s64, %s67
      %p76 = scmp.eq.s32.totalorder %s21, 1
      %p77 = por %p75, %p76
      %p78 = scmp.ne.s32.totalorder %s67, %s68
      %p79 = scmp.eq.s32.totalorder %s21, 0
      %p80 = por %p78, %p79
      %p81 = scmp.ne.s32.totalorder %s67, %s68
      %p82 = scmp.eq.s32.totalorder %s22, 1
      %p83 = por %p81, %p82
      %p85 = scmp.ne.s32.totalorder %s68, %s84
      %p86 = scmp.eq.s32.totalorder %s22, 0
      %p87 = por %p85, %p86
      %s88 = ssub.s32 %s24, %s31
      %p89 = scmp.eq.s32.totalorder %s88, 0
      %s91 = sadd.s32 %s90, 1
      %s92 = scalar_select %p89, %s90, %s91
      %p95 = pneg %p89
      %p96 = scmp.eq.s32.totalorder %s16, 1
      %p97 = por %p95, %p96
      %p98 = scmp.ne.s32.totalorder %s90, %s93
      %p99 = scmp.eq.s32.totalorder %s16, 0
      %p100 = por %p98, %p99
      %p101 = scmp.ne.s32.totalorder %s90, %s93
      %p102 = scmp.eq.s32.totalorder %s21, 1
      %p103 = por %p101, %p102
      %p104 = scmp.ne.s32.totalorder %s93, %s94
      %p105 = scmp.eq.s32.totalorder %s21, 0
      %p106 = por %p104, %p105
      %p107 = scmp.ne.s32.totalorder %s93, %s94
      %p108 = scmp.eq.s32.totalorder %s22, 1
      %p109 = por %p107, %p108
      %p111 = scmp.ne.s32.totalorder %s94, %s110
      %p112 = scmp.eq.s32.totalorder %s22, 0
      %p113 = por %p111, %p112
      %s114 = ssub.s32 %s23, %s35
      %p115 = scmp.eq.s32.totalorder %s114, 0
      %s117 = sadd.s32 %s116, 1
      %s118 = scalar_select %p115, %s116, %s117
      %p121 = pneg %p115
      %p122 = scmp.eq.s32.totalorder %s16, 1
      %p123 = por %p121, %p122
      %p124 = scmp.ne.s32.totalorder %s116, %s119
      %p125 = scmp.eq.s32.totalorder %s16, 0
      %p126 = por %p124, %p125
      %p127 = scmp.ne.s32.totalorder %s116, %s119
      %p128 = scmp.eq.s32.totalorder %s21, 1
      %p129 = por %p127, %p128
      %p130 = scmp.ne.s32.totalorder %s119, %s120
      %p131 = scmp.eq.s32.totalorder %s21, 0
      %p132 = por %p130, %p131
      %p133 = scmp.ne.s32.totalorder %s119, %s120
      %p134 = scmp.eq.s32.totalorder %s22, 1
      %p135 = por %p133, %p134
      %p137 = scmp.ne.s32.totalorder %s120, %s136
      %p138 = scmp.eq.s32.totalorder %s22, 0
      %p139 = por %p137, %p138
      %p140 = scmp.le.s32.totalorder 1, %s16
      %p141 = scmp.lt.s32.totalorder %s16, 3
      %p142 = pnand %p140, %p141
      %p143 = pneg %p142
      // Predicated region
      $region9: #{rwkv_cmix_x070.1} parent=5 // pred_check
        _
      $region10: #{rwkv_cmix_x070.1} parent=5 // pred_check_branch
        %145 = sbr.rel (%p142) target = $region12
      $region11: #{rwkv_cmix_x070.1} parent=5 // pred_region
        %s146 = ssub.s32 %s16, 1
        // Predicated region
        $region13: #{rwkv_cmix_x070.1} parent=11 // pred_check
          %p147 = pneg %p54
        $region14: #{rwkv_cmix_x070.1} parent=11 // pred_check_branch
          %149 = sbr.rel (%p147) target = $region16
        $region15: #{rwkv_cmix_x070.1} parent=11 // pred_region
          %s150 = smul.u32 2, %s25
          %p151 = scmp.lt.s32.totalorder %s150, 1
          %s152 = scalar_select %p151, %s150, 1
          %s153 = smul.addr %s152, 4
          %s154 = scalar_lea.vmem %s0, %s153
          %s155 = smul.u32 2, %s25
        $region16: #{rwkv_cmix_x070.1} parent=11 // pred_fallthru
          _
      $region12: #{rwkv_cmix_x070.1} parent=5 // pred_fallthru
        _
      %p156 = scmp.lt.s32.totalorder %s16, 2
      // Predicated region
      $region17: #{rwkv_cmix_x070.1} parent=5 // pred_check
        %p157 = pneg %p156
      $region18: #{rwkv_cmix_x070.1} parent=5 // pred_check_branch
        %159 = sbr.rel (%p157) target = $region20
      $region19: #{rwkv_cmix_x070.1} parent=5 // pred_region
        // Predicated region
        $region21: #{rwkv_cmix_x070.1} parent=19 // pred_check
          %p160 = pneg %p74
        $region22: #{rwkv_cmix_x070.1} parent=19 // pred_check_branch
          %162 = sbr.rel (%p160) target = $region24
        $region23: #{rwkv_cmix_x070.1} parent=19 // pred_region
          %s163 = sand.u32 %s64, 1
          %s164 = scalar_lea.sflag [#allocation3], %s163
          %s165 = sand.u32 %s64, 1
          %s166 = smul.addr %s165, 128
          %s167 = scalar_lea.vmem [#allocation2], %s166
          %s168 = smul.u32 2, %s24
          %s170 = ssub.s32 2048, 2048
          %171 = vsyncadd %s164, %s170
          %s172 = smul.addr %s168, 64
          %s173 = scalar_lea.hbm %s1, %s172
          %s174 = sshll.u32 %s167, 4
          %s175 = int_to_ptr.vmem [resolvable:$true] %s174
          %180 = dma.hbm_to_vmem [thread:$0]  %s173, 2048, %s175, %s164, 256, 128, 8
        $region24: #{rwkv_cmix_x070.1} parent=19 // pred_fallthru
          _
        // Predicated region
        $region25: #{rwkv_cmix_x070.1} parent=19 // pred_check
          %p181 = pneg %p100
        $region26: #{rwkv_cmix_x070.1} parent=19 // pred_check_branch
          %183 = sbr.rel (%p181) target = $region28
        $region27: #{rwkv_cmix_x070.1} parent=19 // pred_region
          %s184 = sand.u32 %s90, 1
          %s185 = scalar_lea.sflag [#allocation6], %s184
          %s186 = sand.u32 %s90, 1
          %s187 = smul.addr %s186, 128
          %s188 = scalar_lea.vmem [#allocation5], %s187
          %s189 = smul.u32 32, %s24
          %s191 = ssub.s32 2048, 2048
          %192 = vsyncadd %s185, %s191
          %s193 = smul.addr %s189, 64
          %s194 = scalar_lea.hbm %s2, %s193
          %s195 = sshll.u32 %s188, 4
          %s196 = int_to_ptr.vmem [resolvable:$true] %s195
          %201 = dma.hbm_to_vmem [thread:$0]  %s194, 2048, %s196, %s185, 64, 64, 4
        $region28: #{rwkv_cmix_x070.1} parent=19 // pred_fallthru
          _
      $region20: #{rwkv_cmix_x070.1} parent=5 // pred_fallthru
        _
      %p202 = scmp.le.s32.totalorder 1, %s16
      %p203 = scmp.lt.s32.totalorder %s16, 3
      %p204 = pnand %p202, %p203
      %p205 = pneg %p204
      // Predicated region
      $region29: #{rwkv_cmix_x070.1} parent=5 // pred_check
        _
      $region30: #{rwkv_cmix_x070.1} parent=5 // pred_check_branch
        %207 = sbr.rel (%p204) target = $region32
      $region31: #{rwkv_cmix_x070.1} parent=5 // pred_region
        %s208 = ssub.s32 %s16, 1
        %s209 = sand.u32 %s67, 1
        %s210 = scalar_lea.sflag [#allocation3], %s209
        %s211 = sand.u32 %s67, 1
        %s212 = smul.addr %s211, 128
        %s213 = scalar_lea.vmem [#allocation2], %s212
        // Predicated region
        $region33: #{rwkv_cmix_x070.1} parent=31 // pred_check
          %p214 = pneg %p80
        $region34: #{rwkv_cmix_x070.1} parent=31 // pred_check_branch
          %216 = sbr.rel (%p214) target = $region36
        $region35: #{rwkv_cmix_x070.1} parent=31 // pred_region
          %217 = dma.done %s210, 2048
        $region36: #{rwkv_cmix_x070.1} parent=31 // pred_fallthru
          _
        %s218 = sand.u32 %s93, 1
        %s219 = scalar_lea.sflag [#allocation6], %s218
        %s220 = sand.u32 %s93, 1
        %s221 = smul.addr %s220, 128
        %s222 = scalar_lea.vmem [#allocation5], %s221
        // Predicated region
        $region37: #{rwkv_cmix_x070.1} parent=31 // pred_check
          %p223 = pneg %p106
        $region38: #{rwkv_cmix_x070.1} parent=31 // pred_check_branch
          %225 = sbr.rel (%p223) target = $region40
        $region39: #{rwkv_cmix_x070.1} parent=31 // pred_region
          %226 = dma.done %s219, 2048
        $region40: #{rwkv_cmix_x070.1} parent=31 // pred_fallthru
          _
        %s227 = smul.u32 2, %s25
        %p228 = scmp.lt.s32.totalorder %s227, 1
        %s229 = scalar_select %p228, %s227, 1
        %s230 = smul.addr %s229, 4
        %s231 = scalar_lea.vmem %s0, %s230
        %p232 = pneg %p54
        %p233 = pneg %p51
        %s234 = sand.u32 %s67, 1
        %s235 = scalar_lea.sflag [#allocation3], %s234
        %s236 = sand.u32 %s67, 1
        %s237 = smul.addr %s236, 128
        %s238 = scalar_lea.vmem [#allocation2], %s237
        %p239 = pneg %p80
        %p240 = pneg %p77
        %s241 = sand.u32 %s93, 1
        %s242 = scalar_lea.sflag [#allocation6], %s241
        %s243 = sand.u32 %s93, 1
        %s244 = smul.addr %s243, 128
        %s245 = scalar_lea.vmem [#allocation5], %s244
        %p246 = pneg %p106
        %p247 = pneg %p103
        %p248 = pneg %p132
        %p249 = pneg %p129
        %s250 = smul.u32 2, %s25
        %p251 = scmp.lt.s32.totalorder %s250, 1
        %s252 = scalar_select %p251, %s250, 1
        %s253 = smul.addr %s252, 4
        %s254 = scalar_lea.vmem %s0, %s253
        %s255 = smul.u32 2, %s25
        %s256 = smul.u32 2, %s26
        %s257 = smul.u32 32, %s26
        %s258 = smul.u32 2, %s25
        %p260 = scmp.eq.s32.totalorder %s26, 0
        // Predicated region
        $region41: #{rwkv_cmix_x070.1} parent=31 // pred_check
          %p261 = pneg %p260
        $region42: #{rwkv_cmix_x070.1} parent=31 // pred_check_branch
          %263 = sbr.rel (%p261) target = $region44
        $region43: #{rwkv_cmix_x070.1} parent=31 // pred_region
          %264 = vst [vmem:[#allocation7] sm:$0xff] 0.0
          %265 = vst [vmem:[#allocation7 + $0x8] sm:$0xff] 0.0
        $region44: #{rwkv_cmix_x070.1} parent=31 // pred_fallthru
          _
        %v266 = vld [vmem:[%s254] sm:$0xf]
        %v267 = vld [vmem:[%s254 + $0x4] sm:$0xf]
        %v268 = vld [vmem:[%s213] sm:$0xff]
        %v269 = vld [vmem:[%s213 + $0x8] sm:$0xff]
        %v270 = vld [vmem:[%s213 + $0x10] sm:$0xff]
        %v271 = vld [vmem:[%s213 + $0x18] sm:$0xff]
        %v272 = vld [vmem:[%s213 + $0x20] sm:$0xff]
        %v273 = vld [vmem:[%s213 + $0x28] sm:$0xff]
        %v274 = vld [vmem:[%s213 + $0x30] sm:$0xff]
        %v275 = vld [vmem:[%s213 + $0x38] sm:$0xff]
        %v276 = vld [vmem:[%s213 + $0x40] sm:$0xff]
        %v277 = vld [vmem:[%s213 + $0x48] sm:$0xff]
        %v278 = vld [vmem:[%s213 + $0x50] sm:$0xff]
        %v279 = vld [vmem:[%s213 + $0x58] sm:$0xff]
        %v280 = vld [vmem:[%s213 + $0x60] sm:$0xff]
        %v281 = vld [vmem:[%s213 + $0x68] sm:$0xff]
        %v282 = vld [vmem:[%s213 + $0x70] sm:$0xff]
        %v283 = vld [vmem:[%s213 + $0x78] sm:$0xff]
        %v286 = vunpack.c.l.b16 %v266
        %v287 = vunpack.c.l.b16 %v267
        %v288 = vpack.c.b16 %v287, %v286
        %v306 = vunpack.c.l.b16 %v268
        %v307 = vunpack.c.h.b16 %v268
        %v308 = vunpack.c.l.b16 %v269
        %v309 = vunpack.c.h.b16 %v269
        %v310 = vunpack.c.l.b16 %v270
        %v311 = vunpack.c.h.b16 %v270
        %v312 = vunpack.c.l.b16 %v271
        %v313 = vunpack.c.h.b16 %v271
        %v314 = vunpack.c.l.b16 %v272
        %v315 = vunpack.c.h.b16 %v272
        %v316 = vunpack.c.l.b16 %v273
        %v317 = vunpack.c.h.b16 %v273
        %v318 = vunpack.c.l.b16 %v274
        %v319 = vunpack.c.h.b16 %v274
        %v320 = vunpack.c.l.b16 %v275
        %v321 = vunpack.c.h.b16 %v275
        %v322 = vunpack.c.l.b16 %v276
        %v323 = vunpack.c.h.b16 %v276
        %v324 = vunpack.c.l.b16 %v277
        %v325 = vunpack.c.h.b16 %v277
        %v326 = vunpack.c.l.b16 %v278
        %v327 = vunpack.c.h.b16 %v278
        %v328 = vunpack.c.l.b16 %v279
        %v329 = vunpack.c.h.b16 %v279
        %v330 = vunpack.c.l.b16 %v280
        %v331 = vunpack.c.h.b16 %v280
        %v332 = vunpack.c.l.b16 %v281
        %v333 = vunpack.c.h.b16 %v281
        %v334 = vunpack.c.l.b16 %v282
        %v335 = vunpack.c.h.b16 %v282
        %v336 = vunpack.c.l.b16 %v283
        %v337 = vunpack.c.h.b16 %v283
        %v338 = vpack.c.b16 %v308, %v306
        %v339 = vpack.c.b16 %v309, %v307
        %v340 = vpack.c.b16 %v312, %v310
        %v341 = vpack.c.b16 %v313, %v311
        %v342 = vpack.c.b16 %v316, %v314
        %v343 = vpack.c.b16 %v317, %v315
        %v344 = vpack.c.b16 %v320, %v318
        %v345 = vpack.c.b16 %v321, %v319
        %v346 = vpack.c.b16 %v324, %v322
        %v347 = vpack.c.b16 %v325, %v323
        %v348 = vpack.c.b16 %v328, %v326
        %v349 = vpack.c.b16 %v329, %v327
        %v350 = vpack.c.b16 %v332, %v330
        %v351 = vpack.c.b16 %v333, %v331
        %v352 = vpack.c.b16 %v336, %v334
        %v353 = vpack.c.b16 %v337, %v335
        %370 = vmatprep.subr.bf16.mxu0 %v339
        %371 = vmatpush1.bf16.msra.mxu0 %v338
        %372 = vmatprep.subr.bf16.mxu0 %v341
        %373 = vmatpush1.bf16.msra.mxu0 %v340
        %374 = vmatprep.subr.bf16.mxu0 %v343
        %375 = vmatpush1.bf16.msra.mxu0 %v342
        %376 = vmatprep.subr.bf16.mxu0 %v345
        %377 = vmatpush1.bf16.msra.mxu0 %v344
        %378 = vmatprep.subr.bf16.mxu0 %v347
        %379 = vmatpush1.bf16.msra.mxu0 %v346
        %380 = vmatprep.subr.bf16.mxu0 %v349
        %381 = vmatpush1.bf16.msra.mxu0 %v348
        %382 = vmatprep.subr.bf16.mxu0 %v351
        %383 = vmatpush1.bf16.msra.mxu0 %v350
        %384 = vmatprep.subr.bf16.mxu0 %v353
        %385 = vmatpush1.bf16.msra.mxu0 %v352
        %386 = vmatprep.subr.bf16.mxu0 0
        %387 = vmatpush1.bf16.msra.mxu0 0
        %388 = vmatprep.subr.bf16.mxu0 0
        %389 = vmatpush1.bf16.msra.mxu0 0
        %390 = vmatprep.subr.bf16.mxu0 0
        %391 = vmatpush1.bf16.msra.mxu0 0
        %392 = vmatprep.subr.bf16.mxu0 0
        %393 = vmatpush1.bf16.msra.mxu0 0
        %394 = vmatprep.subr.bf16.mxu0 0
        %395 = vmatpush1.bf16.msra.mxu0 0
        %396 = vmatprep.subr.bf16.mxu0 0
        %397 = vmatpush1.bf16.msra.mxu0 0
        %398 = vmatprep.subr.bf16.mxu0 0
        %399 = vmatpush1.bf16.msra.mxu0 0
        %400 = vmatprep.subr.bf16.mxu0 0
        %401 = vmatpush1.bf16.msra.mxu0 0
        %402 = vmatprep.mubr.bf16.mxu0 0
        %403 = vmatmul.mubr.bf16.gmra.mrb[0].mxu0 %v288
        %v404 = vpop.f32.mrb[0].mxu0
        %v405 = vadd.f32 0.0, %v404
        %v406 = vpop.f32.mrb[0].mxu0
        %v407 = vadd.f32 0.0, %v406
        %v408 = vpop.f32.mrb[0].mxu0
        %v409 = vadd.f32 0.0, %v408
        %v410 = vpop.f32.mrb[0].mxu0
        %v411 = vadd.f32 0.0, %v410
        %412 = vdwg.mxu0
        %v413 = vmax.f32 %v405, 0.0
        %v414 = vmax.f32 %v407, 0.0
        %v415 = vmax.f32 %v409, 0.0
        %v416 = vmax.f32 %v411, 0.0
        %v417 = vmul.f32 %v413, %v413
        %v418 = vmul.f32 %v414, %v414
        %v419 = vmul.f32 %v415, %v415
        %v420 = vmul.f32 %v416, %v416
        %v421 = vld [vmem:[#allocation7] sm:$0xff]
        %v422 = vld [vmem:[#allocation7 + $0x8] sm:$0xff]
        %v423 = vpack.c.bf16 %v419, %v417
        %v424 = vpack.c.bf16 %v420, %v418
        %v425 = vld [vmem:[%s222] sm:$0xf]
        %v426 = vld [vmem:[%s222 + $0x4] sm:$0xf]
        %v427 = vld [vmem:[%s222 + $0x8] sm:$0xf]
        %v428 = vld [vmem:[%s222 + $0xc] sm:$0xf]
        %v429 = vld [vmem:[%s222 + $0x10] sm:$0xf]
        %v430 = vld [vmem:[%s222 + $0x14] sm:$0xf]
        %v431 = vld [vmem:[%s222 + $0x18] sm:$0xf]
        %v432 = vld [vmem:[%s222 + $0x1c] sm:$0xf]
        %v433 = vld [vmem:[%s222 + $0x20] sm:$0xf]
        %v434 = vld [vmem:[%s222 + $0x24] sm:$0xf]
        %v435 = vld [vmem:[%s222 + $0x28] sm:$0xf]
        %v436 = vld [vmem:[%s222 + $0x2c] sm:$0xf]
        %v437 = vld [vmem:[%s222 + $0x30] sm:$0xf]
        %v438 = vld [vmem:[%s222 + $0x34] sm:$0xf]
        %v439 = vld [vmem:[%s222 + $0x38] sm:$0xf]
        %v440 = vld [vmem:[%s222 + $0x3c] sm:$0xf]
        %v441 = vld [vmem:[%s222 + $0x40] sm:$0xf]
        %v442 = vld [vmem:[%s222 + $0x44] sm:$0xf]
        %v443 = vld [vmem:[%s222 + $0x48] sm:$0xf]
        %v444 = vld [vmem:[%s222 + $0x4c] sm:$0xf]
        %v445 = vld [vmem:[%s222 + $0x50] sm:$0xf]
        %v446 = vld [vmem:[%s222 + $0x54] sm:$0xf]
        %v447 = vld [vmem:[%s222 + $0x58] sm:$0xf]
        %v448 = vld [vmem:[%s222 + $0x5c] sm:$0xf]
        %v449 = vld [vmem:[%s222 + $0x60] sm:$0xf]
        %v450 = vld [vmem:[%s222 + $0x64] sm:$0xf]
        %v451 = vld [vmem:[%s222 + $0x68] sm:$0xf]
        %v452 = vld [vmem:[%s222 + $0x6c] sm:$0xf]
        %v453 = vld [vmem:[%s222 + $0x70] sm:$0xf]
        %v454 = vld [vmem:[%s222 + $0x74] sm:$0xf]
        %v455 = vld [vmem:[%s222 + $0x78] sm:$0xf]
        %v456 = vld [vmem:[%s222 + $0x7c] sm:$0xf]
        %v489 = vunpack.c.l.b16 %v425
        %v490 = vunpack.c.l.b16 %v426
        %v491 = vunpack.c.l.b16 %v427
        %v492 = vunpack.c.l.b16 %v428
        %v493 = vunpack.c.l.b16 %v429
        %v494 = vunpack.c.l.b16 %v430
        %v495 = vunpack.c.l.b16 %v431
        %v496 = vunpack.c.l.b16 %v432
        %v497 = vunpack.c.l.b16 %v433
        %v498 = vunpack.c.l.b16 %v434
        %v499 = vunpack.c.l.b16 %v435
        %v500 = vunpack.c.l.b16 %v436
        %v501 = vunpack.c.l.b16 %v437
        %v502 = vunpack.c.l.b16 %v438
        %v503 = vunpack.c.l.b16 %v439
        %v504 = vunpack.c.l.b16 %v440
        %v505 = vunpack.c.l.b16 %v441
        %v506 = vunpack.c.l.b16 %v442
        %v507 = vunpack.c.l.b16 %v443
        %v508 = vunpack.c.l.b16 %v444
        %v509 = vunpack.c.l.b16 %v445
        %v510 = vunpack.c.l.b16 %v446
        %v511 = vunpack.c.l.b16 %v447
        %v512 = vunpack.c.l.b16 %v448
        %v513 = vunpack.c.l.b16 %v449
        %v514 = vunpack.c.l.b16 %v450
        %v515 = vunpack.c.l.b16 %v451
        %v516 = vunpack.c.l.b16 %v452
        %v517 = vunpack.c.l.b16 %v453
        %v518 = vunpack.c.l.b16 %v454
        %v519 = vunpack.c.l.b16 %v455
        %v520 = vunpack.c.l.b16 %v456
        %v521 = vpack.c.b16 %v490, %v489
        %v522 = vpack.c.b16 %v492, %v491
        %v523 = vpack.c.b16 %v494, %v493
        %v524 = vpack.c.b16 %v496, %v495
        %v525 = vpack.c.b16 %v498, %v497
        %v526 = vpack.c.b16 %v500, %v499
        %v527 = vpack.c.b16 %v502, %v501
        %v528 = vpack.c.b16 %v504, %v503
        %v529 = vpack.c.b16 %v506, %v505
        %v530 = vpack.c.b16 %v508, %v507
        %v531 = vpack.c.b16 %v510, %v509
        %v532 = vpack.c.b16 %v512, %v511
        %v533 = vpack.c.b16 %v514, %v513
        %v534 = vpack.c.b16 %v516, %v515
        %v535 = vpack.c.b16 %v518, %v517
        %v536 = vpack.c.b16 %v520, %v519
        %553 = vmatprep.subr.bf16.mxu0 0
        %554 = vmatpush1.bf16.msra.mxu0 %v521
        %555 = vmatprep.subr.bf16.mxu0 0
        %556 = vmatpush1.bf16.msra.mxu0 %v522
        %557 = vmatprep.subr.bf16.mxu0 0
        %558 = vmatpush1.bf16.msra.mxu0 %v523
        %559 = vmatprep.subr.bf16.mxu0 0
        %560 = vmatpush1.bf16.msra.mxu0 %v524
        %561 = vmatprep.subr.bf16.mxu0 0
        %562 = vmatpush1.bf16.msra.mxu0 %v525
        %563 = vmatprep.subr.bf16.mxu0 0
        %564 = vmatpush1.bf16.msra.mxu0 %v526
        %565 = vmatprep.subr.bf16.mxu0 0
        %566 = vmatpush1.bf16.msra.mxu0 %v527
        %567 = vmatprep.subr.bf16.mxu0 0
        %568 = vmatpush1.bf16.msra.mxu0 %v528
        %569 = vmatprep.subr.bf16.mxu0 0
        %570 = vmatpush1.bf16.msra.mxu0 %v529
        %571 = vmatprep.subr.bf16.mxu0 0
        %572 = vmatpush1.bf16.msra.mxu0 %v530
        %573 = vmatprep.subr.bf16.mxu0 0
        %574 = vmatpush1.bf16.msra.mxu0 %v531
        %575 = vmatprep.subr.bf16.mxu0 0
        %576 = vmatpush1.bf16.msra.mxu0 %v532
        %577 = vmatprep.subr.bf16.mxu0 0
        %578 = vmatpush1.bf16.msra.mxu0 %v533
        %579 = vmatprep.subr.bf16.mxu0 0
        %580 = vmatpush1.bf16.msra.mxu0 %v534
        %581 = vmatprep.subr.bf16.mxu0 0
        %582 = vmatpush1.bf16.msra.mxu0 %v535
        %583 = vmatprep.subr.bf16.mxu0 0
        %584 = vmatpush1.bf16.msra.mxu0 %v536
        %585 = vmatprep.mubr.bf16.mxu0 %v424
        %586 = vmatmul.mubr.bf16.gmra.mrb[0].mxu0 %v423
        %v587 = vpop.f32.mrb[0].mxu0
        %v588 = vadd.f32 0.0, %v587
        %v589 = vpop.f32.mrb[0].mxu0
        %v590 = vpop.f32.mrb[0].mxu0
        %v591 = vadd.f32 0.0, %v590
        %v592 = vpop.f32.mrb[0].mxu0
        %593 = vdwg.mxu0
        %v594 = vadd.f32 %v421, %v588
        %v595 = vadd.f32 %v422, %v591
        %596 = vst [vmem:[#allocation7] sm:$0xff] %v594
        %597 = vst [vmem:[#allocation7 + $0x8] sm:$0xff] %v595
        // Predicated region
        $region45: #{rwkv_cmix_x070.1} parent=31 // pred_check
          %p598 = pneg %p129
        $region46: #{rwkv_cmix_x070.1} parent=31 // pred_check_branch
          %600 = sbr.rel (%p598) target = $region48
        $region47: #{rwkv_cmix_x070.1} parent=31 // pred_region
          %s601 = smul.u32 2, %s25
          %s603 = ssub.s32 256, 256
          %604 = vsyncadd [#allocation4], %s603
          %s605 = smul.addr %s601, 128
          %s606 = scalar_lea.hbm %s3, %s605
          %s607 = sshll.u32 [#allocation7], 4
          %s608 = int_to_ptr.vmem [resolvable:$true] %s607
          %613 = dma.vmem_to_hbm [thread:$0]  %s608, 256, %s606, [#allocation4], 128, 128, 8
        $region48: #{rwkv_cmix_x070.1} parent=31 // pred_fallthru
          _
        // Predicated region
        $region49: #{rwkv_cmix_x070.1} parent=31 // pred_check
          %p614 = pneg %p129
        $region50: #{rwkv_cmix_x070.1} parent=31 // pred_check_branch
          %616 = sbr.rel (%p614) target = $region52
        $region51: #{rwkv_cmix_x070.1} parent=31 // pred_region
          %617 = dma.done [#allocation4], 256
        $region52: #{rwkv_cmix_x070.1} parent=31 // pred_fallthru
          _
      $region32: #{rwkv_cmix_x070.1} parent=5 // pred_fallthru
        _
      %p618 = scmp.le.s32.totalorder 2, %s16
      // Predicated region
      $region53: #{rwkv_cmix_x070.1} parent=5 // pred_check
        %p619 = pneg %p618
      $region54: #{rwkv_cmix_x070.1} parent=5 // pred_check_branch
        %621 = sbr.rel (%p619) target = $region56
      $region55: #{rwkv_cmix_x070.1} parent=5 // pred_region
        %s622 = ssub.s32 %s16, 2
      $region56: #{rwkv_cmix_x070.1} parent=5 // pred_fallthru
        _
    $region6: #{rwkv_cmix_x070.1} parent=1 // loop_footer
      %s20 = sadd.s32 1, %s16
    $region7: #{rwkv_cmix_x070.1} parent=1 // loop_footer_branch
      %15 = sbr.rel target = $region3
    $region8: #{rwkv_cmix_x070.1} parent=1 // loop_exit
      _
    %623 = vsyncpa [#allocation3], 1
    %s624 = scalar_lea.sflag [#allocation3], 1
    %625 = vsyncpa %s624, 1
    %626 = vsyncpa [#allocation6], 1
    %s627 = scalar_lea.sflag [#allocation6], 1
    %628 = vsyncpa %s627, 1
    %629 = vsyncpa [#allocation4], 1
    %s630 = scalar_lea.sflag [#allocation4], 1
    %631 = vsyncpa %s630, 1

</llo_original>
